<compile_context>
chip_gen: v7x
topology: tpu7x:2x2x1
jax: 0.10.0
libtpu: 0.0.40
codegen_flags: <defaults>
</compile_context>

<pallas_src>
import jax
import jax.numpy as jnp
import numpy as np
from jax.experimental import pallas as pl
from jax.experimental.pallas import tpu as pltpu

LN_EPS = 1e-5
_VMEM_LIMIT = 40 * 1024 * 1024   # above the 16/32 MiB scoped defaults, below v7x's 64 MiB


# ------------------------------- helpers ------------------------------------

def _layernorm(x, gamma, beta):
    mu = jnp.mean(x, axis=-1, keepdims=True)
    var = jnp.mean((x - mu) ** 2, axis=-1, keepdims=True)
    return (x - mu) * jax.lax.rsqrt(var + LN_EPS) * gamma + beta


def _row_tile(n, cap=256):
    """Largest multiple-of-8 divisor of n that is <= cap (else the full extent)."""
    for c in range(min(n, cap), 7, -1):
        if n % c == 0 and c % 8 == 0:
            return c
    return n


def _time_tile(s, cap=4):
    """Largest divisor of s that is <= cap (timesteps per GRU grid step)."""
    for c in range(min(s, cap), 0, -1):
        if s % c == 0:
            return c
    return 1


# ---------------------------- Pallas kernels ---------------------------------

def embed_ln_proj_kernel(ids_ref, mask_ref, tbl_ref, gamma_ref, beta_ref,
                         wih_ref, bih_ref, xw_ref):
    """Embedding lookup + LayerNorm + mask, fused with the GRU input projection
    (both directions) so the serial recurrence only does h @ Whh."""
    n = ids_ref.shape[0]
    v = tbl_ref.shape[0]
    g3 = xw_ref.shape[2]

    ids = ids_ref[...]                                              # (TM, 1) int32
    # TODO(synk): for production vocab sizes replace this one-hot MXU lookup with a
    # scalar-prefetch / DMA row gather against an HBM-resident table.
    iota = jax.lax.broadcasted_iota(jnp.int32, (n, v), 1)
    onehot = (iota == ids).astype(jnp.bfloat16)
    emb = jnp.dot(onehot, tbl_ref[...], preferred_element_type=jnp.float32)   # (TM, H)
    y = _layernorm(emb, gamma_ref[...], beta_ref[...]) * mask_ref[...]
    xw = jnp.dot(y.astype(jnp.bfloat16), wih_ref[...],
                 preferred_element_type=jnp.float32) + bih_ref[...]           # (TM, 6G)
    xw_ref[0] = xw[:, :g3]                                           # forward direction
    xw_ref[1] = xw[:, g3:]                                           # backward direction


def gru_kernel(xw_ref, whh_ref, bhh_ref, out_ref, h_ref):
    """T timesteps of one GRU direction per grid step (direction = grid axis 0).
    Only the hidden matmul remains in the serial loop; gates are fused (G, 3G)."""
    d = pl.program_id(0)

    @pl.when(pl.program_id(1) == 0)
    def _():
        h_ref[...] = jnp.zeros_like(h_ref)

    t_blk = xw_ref.shape[1]
    g = h_ref.shape[1]
    whh = whh_ref[0]                                   # (G, 3G) bf16, loaded once/block
    bhh = bhh_ref[0]                                   # (1, 3G) f32

    def step(tt, carry):
        # forward walks the block 0..T-1, backward walks T-1..0
        t_idx = tt * (1 - 2 * d) + d * (t_blk - 1)
        xg = xw_ref[0, t_idx]                          # (B, 3G) precomputed x@Wih + bih
        h = h_ref[...]                                 # (B, G) f32 carry
        hg = jnp.dot(h.astype(jnp.bfloat16), whh,
                     preferred_element_type=jnp.float32) + bhh      # (B, 3G)
        r = jax.nn.sigmoid(xg[:, :g] + hg[:, :g])
        z = jax.nn.sigmoid(xg[:, g:2 * g] + hg[:, g:2 * g])
        n = jnp.tanh(xg[:, 2 * g:] + r * hg[:, 2 * g:])
        h_new = (1.0 - z) * n + z * h
        h_ref[...] = h_new
        out_ref[0, t_idx] = h_new
        return carry

    jax.lax.fori_loop(0, t_blk, step, 0, unroll=True)


def gated_out_kernel(enc_ref, mask_ref, wg_ref, bg_ref, wo_ref, bo_ref,
                     gamma_ref, beta_ref, out_ref):
    """(fwd + bwd) -> fused imner/imgate matmul -> output projection -> LayerNorm -> mask."""
    h = wo_ref.shape[1]
    enc = enc_ref[0] + enc_ref[1]                                   # (TM, G) f32
    ag = jnp.dot(enc.astype(jnp.bfloat16), wg_ref[...],
                 preferred_element_type=jnp.float32) + bg_ref[...]  # (TM, 2H)
    gated = ag[:, :h] * jax.nn.sigmoid(ag[:, h:])
    o = jnp.dot(gated.astype(jnp.bfloat16), wo_ref[...],
                preferred_element_type=jnp.float32) + bo_ref[...]
    y = _layernorm(o, gamma_ref[...], beta_ref[...])
    out_ref[...] = y * mask_ref[...]


# ------------------------------ wrappers -------------------------------------

def embed_ln_project(ids_flat, mask_flat, tbl, gamma, beta, wih_cat, bih_cat):
    n = ids_flat.shape[0]
    v, h = tbl.shape
    g6 = wih_cat.shape[1]
    g3 = g6 // 2
    tm = _row_tile(n)
    const2 = lambda i: (0, 0)
    return pl.pallas_call(
        embed_ln_proj_kernel,
        out_shape=jax.ShapeDtypeStruct((2, n, g3), jnp.float32),
        grid=(n // tm,),
        in_specs=[
            pl.BlockSpec((tm, 1), lambda i: (i, 0)),
            pl.BlockSpec((tm, 1), lambda i: (i, 0)),
            pl.BlockSpec((v, h), const2),
            pl.BlockSpec((1, h), const2),
            pl.BlockSpec((1, h), const2),
            pl.BlockSpec((h, g6), const2),
            pl.BlockSpec((1, g6), const2),
        ],
        out_specs=pl.BlockSpec((2, tm, g3), lambda i: (0, i, 0)),
        compiler_params=pltpu.CompilerParams(
            dimension_semantics=("parallel",),
            vmem_limit_bytes=_VMEM_LIMIT),
    )(ids_flat, mask_flat, tbl, gamma, beta, wih_cat, bih_cat)


def gru_bidirectional(xw4, whh_stk, bhh_stk):
    _, s, b, g3 = xw4.shape
    g = g3 // 3
    t = _time_tile(s)
    nb = s // t

    def time_map(d, i):
        # forward (d=0): block i ; backward (d=1): block nb-1-i
        return (d, i * (1 - 2 * d) + d * (nb - 1), 0, 0)

    return pl.pallas_call(
        gru_kernel,
        out_shape=jax.ShapeDtypeStruct((2, s, b, g), jnp.float32),
        grid=(2, nb),
        in_specs=[
            pl.BlockSpec((1, t, b, g3), time_map),
            pl.BlockSpec((1, g, g3), lambda d, i: (d, 0, 0)),
            pl.BlockSpec((1, 1, g3), lambda d, i: (d, 0, 0)),
        ],
        out_specs=pl.BlockSpec((1, t, b, g), time_map),
        scratch_shapes=[pltpu.VMEM((b, g), jnp.float32)],
        compiler_params=pltpu.CompilerParams(
            dimension_semantics=("parallel", "arbitrary"),
            vmem_limit_bytes=_VMEM_LIMIT),
    )(xw4, whh_stk, bhh_stk)


def gated_output(enc_flat, mask_flat, w_gates, b_gates, w_out, b_out, gamma, beta):
    _, n, g = enc_flat.shape
    h = w_out.shape[1]
    tm = _row_tile(n)
    const2 = lambda i: (0, 0)
    return pl.pallas_call(
        gated_out_kernel,
        out_shape=jax.ShapeDtypeStruct((n, h), jnp.float32),
        grid=(n // tm,),
        in_specs=[
            pl.BlockSpec((2, tm, g), lambda i: (0, i, 0)),
            pl.BlockSpec((tm, 1), lambda i: (i, 0)),
            pl.BlockSpec((g, 2 * h), const2),
            pl.BlockSpec((1, 2 * h), const2),
            pl.BlockSpec((h, h), const2),
            pl.BlockSpec((1, h), const2),
            pl.BlockSpec((1, h), const2),
            pl.BlockSpec((1, h), const2),
        ],
        out_specs=pl.BlockSpec((tm, h), lambda i: (i, 0)),
        compiler_params=pltpu.CompilerParams(
            dimension_semantics=("parallel",),
            vmem_limit_bytes=_VMEM_LIMIT),
    )(enc_flat, mask_flat, w_gates, b_gates, w_out, b_out, gamma, beta)


def sentence_encoder_forward(params, input_idx, seq_lengths):
    b, s = input_idx.shape
    h = params["emb"].shape[1]
    g = 2 * h
    bf16 = jnp.bfloat16

    # Pack / cast weights once (would be done at load time in production):
    tbl = params["emb"].astype(bf16)
    wih_cat = jnp.concatenate([params["wih_f"], params["wih_b"]], axis=1).astype(bf16)  # (H, 6G)
    bih_cat = jnp.concatenate([params["bih_f"], params["bih_b"]], axis=1)               # (1, 6G)
    whh_stk = jnp.stack([params["whh_f"], params["whh_b"]]).astype(bf16)                # (2, G, 3G)
    bhh_stk = jnp.stack([params["bhh_f"], params["bhh_b"]])                             # (2, 1, 3G)
    w_gates = jnp.concatenate([params["w_imner"], params["w_imgate"]], axis=1).astype(bf16)  # (G, 2H)
    b_gates = jnp.concatenate([params["b_imner"], params["b_imgate"]], axis=1)          # (1, 2H)
    w_out = params["w_out"].astype(bf16)

    # attention_mask per the module: cumsum(ones) (values 1..S) < seq_lengths
    mask = ((jnp.arange(s, dtype=jnp.int32) + 1)[None, :]
            < seq_lengths[:, None]).astype(jnp.float32)                                  # (B, S)

    # Time-major flattened row layout (row = t * B + b); only the tiny ids/mask get
    # transposed -- activations stay in this layout end to end.
    ids_flat = input_idx.astype(jnp.int32).T.reshape(s * b, 1)
    mask_flat = mask.T.reshape(s * b, 1)

    xw = embed_ln_project(ids_flat, mask_flat, tbl, params["ln1_g"], params["ln1_b"],
                          wih_cat, bih_cat)                    # (2, S*B, 3G)
    xw4 = xw.reshape(2, s, b, 3 * g)

    enc4 = gru_bidirectional(xw4, whh_stk, bhh_stk)            # (2, S, B, G)

    # TODO(synk): `run_rnn` is undefined in the source and the bidirectional GRU output
    # (4H) does not match Linear(2H, H); the two directions are summed (-> 2H) and the
    # recurrence runs over padded positions instead of packed sequences.
    out_flat = gated_output(enc4.reshape(2, s * b, g), mask_flat,
                            w_gates, b_gates, w_out, params["b_out"],
                            params["ln2_g"], params["ln2_b"])  # (S*B, H)

    # Dropout layers (drop/dropin/dropout) are identity in eval mode.
    return out_flat.reshape(s, b, h).transpose(1, 0, 2)        # (B, S, H)


# ----------------------------- reference (pure JAX) ---------------------------

def reference_forward(params, input_idx, seq_lengths):
    b, s = input_idx.shape
    f32, bf16 = jnp.float32, jnp.bfloat16
    mask = ((jnp.arange(s, dtype=jnp.int32) + 1)[None, :]
            < seq_lengths[:, None]).astype(f32)[..., None]     # (B, S, 1)

    emb = params["emb"].astype(bf16)[input_idx].astype(f32)
    emb = _layernorm(emb, params["ln1_g"], params["ln1_b"]) * mask

    def gru_dir(x_tm_bf, wih, whh, bih, bhh):
        g = whh.shape[0]
        wih_bf, whh_bf = wih.astype(bf16), whh.astype(bf16)
        xw = jnp.dot(x_tm_bf, wih_bf, preferred_element_type=f32) + bih   # (S, B, 3G)

        def step(hprev, xg):
            hg = jnp.dot(hprev.astype(bf16), whh_bf, preferred_element_type=f32) + bhh
            r = jax.nn.sigmoid(xg[:, :g] + hg[:, :g])
            z = jax.nn.sigmoid(xg[:, g:2 * g] + hg[:, g:2 * g])
            n = jnp.tanh(xg[:, 2 * g:] + r * hg[:, 2 * g:])
            hn = (1.0 - z) * n + z * hprev
            return hn, hn

        h0 = jnp.zeros((x_tm_bf.shape[1], g), f32)
        _, ys = jax.lax.scan(step, h0, xw)
        return ys

    x_tm = emb.astype(bf16).transpose(1, 0, 2)
    fwd = gru_dir(x_tm, params["wih_f"], params["whh_f"], params["bih_f"], params["bhh_f"])
    bwd = gru_dir(x_tm[::-1], params["wih_b"], params["whh_b"],
                  params["bih_b"], params["bhh_b"])[::-1]
    enc = (fwd + bwd).transpose(1, 0, 2)                        # (B, S, G)

    enc_bf = enc.astype(bf16)
    a = jnp.dot(enc_bf, params["w_imner"].astype(bf16), preferred_element_type=f32) \
        + params["b_imner"]
    gt = jax.nn.sigmoid(
        jnp.dot(enc_bf, params["w_imgate"].astype(bf16), preferred_element_type=f32)
        + params["b_imgate"])
    o = jnp.dot((a * gt).astype(bf16), params["w_out"].astype(bf16),
                preferred_element_type=f32) + params["b_out"]
    return _layernorm(o, params["ln2_g"], params["ln2_b"]) * mask


# ------------------------------ parameters ------------------------------------

def init_params(key, vocab, h):
    g = 2 * h
    ks = jax.random.split(key, 15)
    scale = 0.2

    def rn(k, shape):
        return jax.random.normal(k, shape, jnp.float32) * scale

    return {
        "emb": rn(ks[0], (vocab, h)),
        "ln1_g": jnp.ones((1, h), jnp.float32),
        "ln1_b": jnp.zeros((1, h), jnp.float32),
        # GRU weights stored transposed, gates (r, z, n) concatenated on the output axis.
        "wih_f": rn(ks[1], (h, 3 * g)), "whh_f": rn(ks[2], (g, 3 * g)),
        "bih_f": rn(ks[3], (1, 3 * g)), "bhh_f": rn(ks[4], (1, 3 * g)),
        "wih_b": rn(ks[5], (h, 3 * g)), "whh_b": rn(ks[6], (g, 3 * g)),
        "bih_b": rn(ks[7], (1, 3 * g)), "bhh_b": rn(ks[8], (1, 3 * g)),
        # Linear layers stored transposed (in, out).
        "w_imner": rn(ks[9], (g, h)), "b_imner": rn(ks[10], (1, h)),
        "w_imgate": rn(ks[11], (g, h)), "b_imgate": rn(ks[12], (1, h)),
        "w_out": rn(ks[13], (h, h)), "b_out": rn(ks[14], (1, h)),
        "ln2_g": jnp.ones((1, h), jnp.float32),
        "ln2_b": jnp.zeros((1, h), jnp.float32),
    }


# --------------------------------- main ----------------------------------------

if __name__ == "__main__":
    B, S, H, V = 2, 8, 32, 64
    key = jax.random.PRNGKey(0)
    k_ids, _ = jax.random.split(key)
    input_idx = jax.random.randint(k_ids, (B, S), 0, V, dtype=jnp.int32)
    seq_lengths = jnp.array([8, 5], dtype=jnp.int32)
    params = init_params(jax.random.PRNGKey(42), V, H)

    out = jax.block_until_ready(sentence_encoder_forward(params, input_idx, seq_lengths))
    ref = jax.block_until_ready(reference_forward(params, input_idx, seq_lengths))
    np.testing.assert_allclose(np.asarray(out), np.asarray(ref), rtol=2e-3, atol=2e-3)
    assert out.shape == (B, S, H)
    print("KERNEL_OK")
</pallas_src>

<mosaic_0001>
module attributes {stable_mosaic.version = 11 : i64} {
  func.func @embed_ln_proj_kernel(%arg0: i32, %arg1: memref<16x1xi32, #tpu.memory_space<vmem>>, %arg2: memref<16x1xf32, #tpu.memory_space<vmem>>, %arg3: memref<64x32xbf16, #tpu.memory_space<vmem>>, %arg4: memref<1x32xf32, #tpu.memory_space<vmem>>, %arg5: memref<1x32xf32, #tpu.memory_space<vmem>>, %arg6: memref<32x384xbf16, #tpu.memory_space<vmem>>, %arg7: memref<1x384xf32, #tpu.memory_space<vmem>>, %arg8: memref<2x16x192xf32, #tpu.memory_space<vmem>>) attributes {dimension_semantics = [#tpu.dimension_semantics<parallel>], iteration_bounds = array<i64: 1>, scalar_prefetch = 0 : i64, scratch_operands = 0 : i64, tpu.core_type = #tpu.core_type<tc>, window_params = [{transform_indices = @transform_0, window_bounds = array<i64: 16, 1>}, {transform_indices = @transform_1, window_bounds = array<i64: 16, 1>}, {pipeline_mode = #tpu.pipeline_mode<synchronous>, transform_indices = @transform_2, window_bounds = array<i64: 64, 32>}, {pipeline_mode = #tpu.pipeline_mode<synchronous>, transform_indices = @transform_3, window_bounds = array<i64: 1, 32>}, {pipeline_mode = #tpu.pipeline_mode<synchronous>, transform_indices = @transform_4, window_bounds = array<i64: 1, 32>}, {pipeline_mode = #tpu.pipeline_mode<synchronous>, transform_indices = @transform_5, window_bounds = array<i64: 32, 384>}, {pipeline_mode = #tpu.pipeline_mode<synchronous>, transform_indices = @transform_6, window_bounds = array<i64: 1, 384>}, {transform_indices = @transform_7, window_bounds = array<i64: 2, 16, 192>}]} {
    %c0 = arith.constant 0 : index
    %c0_0 = arith.constant 0 : index
    %0 = vector.load %arg1[%c0, %c0_0] : memref<16x1xi32, #tpu.memory_space<vmem>>, vector<16x1xi32>
    %1 = tpu.iota {dimensions = array<i32: 1>} : vector<16x64xi32>
    %2 = vector.broadcast %0 : vector<16x1xi32> to vector<16x64xi32>
    %3 = arith.cmpi eq, %1, %2 : vector<16x64xi32>
    %4 = arith.extui %3 : vector<16x64xi1> to vector<16x64xi32>
    %5 = arith.sitofp %4 : vector<16x64xi32> to vector<16x64xf32>
    %6 = arith.truncf %5 : vector<16x64xf32> to vector<16x64xbf16>
    %c0_1 = arith.constant 0 : index
    %c0_2 = arith.constant 0 : index
    %7 = vector.load %arg3[%c0_1, %c0_2] : memref<64x32xbf16, #tpu.memory_space<vmem>>, vector<64x32xbf16>
    %cst = arith.constant dense<0.000000e+00> : vector<16x32xf32>
    %8 = tpu.matmul %6, %7, %cst {dimension_numbers = #tpu.dot_dimension_numbers<[1], [0], [0], [1], [0, 0, 1, 1], [], []>} : vector<16x64xbf16>, vector<64x32xbf16>, vector<16x32xf32> -> vector<16x32xf32>
    %c0_3 = arith.constant 0 : index
    %c0_4 = arith.constant 0 : index
    %9 = vector.load %arg4[%c0_3, %c0_4] : memref<1x32xf32, #tpu.memory_space<vmem>>, vector<1x32xf32>
    %c0_5 = arith.constant 0 : index
    %c0_6 = arith.constant 0 : index
    %10 = vector.load %arg5[%c0_5, %c0_6] : memref<1x32xf32, #tpu.memory_space<vmem>>, vector<1x32xf32>
    %cst_7 = arith.constant dense<0.000000e+00> : vector<16xf32>
    %11 = vector.multi_reduction <add>, %8, %cst_7 [1] : vector<16x32xf32> to vector<16xf32>
    %12 = vector.shape_cast %11 : vector<16xf32> to vector<16x1xf32>
    %cst_8 = arith.constant 3.200000e+01 : f32
    %13 = vector.broadcast %cst_8 : f32 to vector<16x1xf32>
    %14 = arith.divf %12, %13 : vector<16x1xf32>
    %15 = vector.broadcast %14 : vector<16x1xf32> to vector<16x32xf32>
    %16 = arith.subf %8, %15 : vector<16x32xf32>
    %17 = arith.mulf %16, %16 : vector<16x32xf32>
    %cst_9 = arith.constant dense<0.000000e+00> : vector<16xf32>
    %18 = vector.multi_reduction <add>, %17, %cst_9 [1] : vector<16x32xf32> to vector<16xf32>
    %19 = vector.shape_cast %18 : vector<16xf32> to vector<16x1xf32>
    %cst_10 = arith.constant 3.200000e+01 : f32
    %20 = vector.broadcast %cst_10 : f32 to vector<16x1xf32>
    %21 = arith.divf %19, %20 : vector<16x1xf32>
    %22 = vector.broadcast %14 : vector<16x1xf32> to vector<16x32xf32>
    %23 = arith.subf %8, %22 : vector<16x32xf32>
    %cst_11 = arith.constant 9.99999974E-6 : f32
    %24 = vector.broadcast %cst_11 : f32 to vector<16x1xf32>
    %25 = arith.addf %21, %24 : vector<16x1xf32>
    %26 = math.rsqrt %25 : vector<16x1xf32>
    %27 = vector.broadcast %26 : vector<16x1xf32> to vector<16x32xf32>
    %28 = arith.mulf %23, %27 : vector<16x32xf32>
    %29 = vector.broadcast %9 : vector<1x32xf32> to vector<16x32xf32>
    %30 = arith.mulf %28, %29 : vector<16x32xf32>
    %31 = vector.broadcast %10 : vector<1x32xf32> to vector<16x32xf32>
    %32 = arith.addf %30, %31 : vector<16x32xf32>
    %c0_12 = arith.constant 0 : index
    %c0_13 = arith.constant 0 : index
    %33 = vector.load %arg2[%c0_12, %c0_13] : memref<16x1xf32, #tpu.memory_space<vmem>>, vector<16x1xf32>
    %34 = vector.broadcast %33 : vector<16x1xf32> to vector<16x32xf32>
    %35 = arith.mulf %32, %34 : vector<16x32xf32>
    %36 = arith.truncf %35 : vector<16x32xf32> to vector<16x32xbf16>
    %c0_14 = arith.constant 0 : index
    %c0_15 = arith.constant 0 : index
    %37 = vector.load %arg6[%c0_14, %c0_15] : memref<32x384xbf16, #tpu.memory_space<vmem>>, vector<32x384xbf16>
    %cst_16 = arith.constant dense<0.000000e+00> : vector<16x384xf32>
    %38 = tpu.matmul %36, %37, %cst_16 {dimension_numbers = #tpu.dot_dimension_numbers<[1], [0], [0], [1], [0, 0, 1, 1], [], []>} : vector<16x32xbf16>, vector<32x384xbf16>, vector<16x384xf32> -> vector<16x384xf32>
    %c0_17 = arith.constant 0 : index
    %c0_18 = arith.constant 0 : index
    %39 = vector.load %arg7[%c0_17, %c0_18] : memref<1x384xf32, #tpu.memory_space<vmem>>, vector<1x384xf32>
    %40 = vector.broadcast %39 : vector<1x384xf32> to vector<16x384xf32>
    %41 = arith.addf %38, %40 : vector<16x384xf32>
    %42 = vector.extract_strided_slice %41 {offsets = [0, 0], sizes = [16, 192], strides = [1, 1]} : vector<16x384xf32> to vector<16x192xf32>
    %c0_19 = arith.constant 0 : index
    %c0_20 = arith.constant 0 : index
    %c0_21 = arith.constant 0 : index
    %43 = vector.load %arg8[%c0_19, %c0_20, %c0_21] : memref<2x16x192xf32, #tpu.memory_space<vmem>>, vector<1x16x192xf32>
    %44 = vector.shape_cast %43 : vector<1x16x192xf32> to vector<16x192xf32>
    %45 = vector.shape_cast %42 : vector<16x192xf32> to vector<1x16x192xf32>
    tpu.vector_store %arg8[%c0_19, %c0_20, %c0_21], %45 {strides = array<i32>} : memref<2x16x192xf32, #tpu.memory_space<vmem>>, vector<1x16x192xf32>,
    %46 = vector.extract_strided_slice %41 {offsets = [0, 192], sizes = [16, 192], strides = [1, 1]} : vector<16x384xf32> to vector<16x192xf32>
    %c1 = arith.constant 1 : index
    %c0_22 = arith.constant 0 : index
    %c0_23 = arith.constant 0 : index
    %47 = vector.load %arg8[%c1, %c0_22, %c0_23] : memref<2x16x192xf32, #tpu.memory_space<vmem>>, vector<1x16x192xf32>
    %48 = vector.shape_cast %47 : vector<1x16x192xf32> to vector<16x192xf32>
    %49 = vector.shape_cast %46 : vector<16x192xf32> to vector<1x16x192xf32>
    tpu.vector_store %arg8[%c1, %c0_22, %c0_23], %49 {strides = array<i32>} : memref<2x16x192xf32, #tpu.memory_space<vmem>>, vector<1x16x192xf32>,
    return
  }
  func.func @transform_0(%arg0: i32) -> (i32, i32) {
    %c0_i32 = arith.constant 0 : i32
    %c0_i32_0 = arith.constant 0 : i32
    return %arg0, %c0_i32 : i32, i32
  }
  func.func @transform_1(%arg0: i32) -> (i32, i32) {
    %c0_i32 = arith.constant 0 : i32
    %c0_i32_0 = arith.constant 0 : i32
    return %arg0, %c0_i32 : i32, i32
  }
  func.func @transform_2(%arg0: i32) -> (i32, i32) {
    %c0_i32 = arith.constant 0 : i32
    %c0_i32_0 = arith.constant 0 : i32
    %c0_i32_1 = arith.constant 0 : i32
    return %c0_i32, %c0_i32_0 : i32, i32
  }
  func.func @transform_3(%arg0: i32) -> (i32, i32) {
    %c0_i32 = arith.constant 0 : i32
    %c0_i32_0 = arith.constant 0 : i32
    %c0_i32_1 = arith.constant 0 : i32
    return %c0_i32, %c0_i32_0 : i32, i32
  }
  func.func @transform_4(%arg0: i32) -> (i32, i32) {
    %c0_i32 = arith.constant 0 : i32
    %c0_i32_0 = arith.constant 0 : i32
    %c0_i32_1 = arith.constant 0 : i32
    return %c0_i32, %c0_i32_0 : i32, i32
  }
  func.func @transform_5(%arg0: i32) -> (i32, i32) {
    %c0_i32 = arith.constant 0 : i32
    %c0_i32_0 = arith.constant 0 : i32
    %c0_i32_1 = arith.constant 0 : i32
    return %c0_i32, %c0_i32_0 : i32, i32
  }
  func.func @transform_6(%arg0: i32) -> (i32, i32) {
    %c0_i32 = arith.constant 0 : i32
    %c0_i32_0 = arith.constant 0 : i32
    %c0_i32_1 = arith.constant 0 : i32
    return %c0_i32, %c0_i32_0 : i32, i32
  }
  func.func @transform_7(%arg0: i32) -> (i32, i32, i32) {
    %c0_i32 = arith.constant 0 : i32
    %c0_i32_0 = arith.constant 0 : i32
    %c0_i32_1 = arith.constant 0 : i32
    return %c0_i32, %arg0, %c0_i32_0 : i32, i32, i32
  }
}

</mosaic_0001>

<llo_original>
// kernel: tpu_custom_call.1
$region0: #{tpu_custom_call.1}
  #allocation0 [shape = 'u32[]', space=smem, size = 0x4, offset = 0x4, fixed_abs, tag = 'smem constant byte address 0x4 - core index']
  #allocation1 [shape = 'u32[144,128]{1,0:T(1,128)}', space=vmem, size = 0x12000, scoped, tag = 'internal scratch']
  %s0 = inlined_call_operand.vmem [shape: s32[16,1], index: 0, kind: input, shape index: {}]
  %s1 = inlined_call_operand.vmem [shape: f32[16,1], index: 1, kind: input, shape index: {}]
  %s2 = inlined_call_operand.vmem [shape: bf16[64,32], index: 2, kind: input, shape index: {}]
  %s3 = inlined_call_operand.vmem [shape: f32[1,32], index: 3, kind: input, shape index: {}]
  %s4 = inlined_call_operand.vmem [shape: f32[1,32], index: 4, kind: input, shape index: {}]
  %s5 = inlined_call_operand.vmem [shape: bf16[32,384], index: 5, kind: input, shape index: {}]
  %s6 = inlined_call_operand.vmem [shape: f32[1,384], index: 6, kind: input, shape index: {}]
  %s7 = inlined_call_operand.hbm [shape: f32[2,16,192], index: 7, kind: output, shape index: {}]
  %s8 = sld [smem:[#allocation0]]
  $region38: #{tpu_custom_call.1} parent=0
    _
  %s10 = ssub.s32 1, %s8
  %s11 = scalar_select 0, %s10, %s8
  $region1: #{tpu_custom_call.1} parent=0
    #allocation2 [shape = 'u8[32768]{0}', space=vmem, size = 0x8000, scoped, tag = 'output window, operand 0, single buffered']
    #allocation3 [shape = 's32[1]{0}', space=sflag, size = 0x4, scoped, tag = 'scoped memory for tpu_custom_call.1']
    %12 = vsyncpa [#allocation3], 0
    // Predicated region
    $region2: #{tpu_custom_call.1} parent=1 // pred_check
      _
    $region3: #{tpu_custom_call.1} parent=1 // pred_check_branch
      %14 = sbr.rel (0) target = $region5
    $region4: #{tpu_custom_call.1} parent=1 // pred_region
      _
    $region5: #{tpu_custom_call.1} parent=1 // pred_fallthru
      _
    // Predicated region
    $region6: #{tpu_custom_call.1} parent=1 // pred_check
      _
    $region7: #{tpu_custom_call.1} parent=1 // pred_check_branch
      %16 = sbr.rel (0) target = $region9
    $region8: #{tpu_custom_call.1} parent=1 // pred_region
      _
    $region9: #{tpu_custom_call.1} parent=1 // pred_fallthru
      _
    // Predicated region
    $region10: #{tpu_custom_call.1} parent=1 // pred_check
      _
    $region11: #{tpu_custom_call.1} parent=1 // pred_check_branch
      %18 = sbr.rel (0) target = $region13
    $region12: #{tpu_custom_call.1} parent=1 // pred_region
      _
    $region13: #{tpu_custom_call.1} parent=1 // pred_fallthru
      _
    // Predicated region
    $region14: #{tpu_custom_call.1} parent=1 // pred_check
      _
    $region15: #{tpu_custom_call.1} parent=1 // pred_check_branch
      %20 = sbr.rel (0) target = $region17
    $region16: #{tpu_custom_call.1} parent=1 // pred_region
      _
    $region17: #{tpu_custom_call.1} parent=1 // pred_fallthru
      _
    // Predicated region
    $region18: #{tpu_custom_call.1} parent=1 // pred_check
      _
    $region19: #{tpu_custom_call.1} parent=1 // pred_check_branch
      %22 = sbr.rel (0) target = $region21
    $region20: #{tpu_custom_call.1} parent=1 // pred_region
      _
    $region21: #{tpu_custom_call.1} parent=1 // pred_fallthru
      _
    // Predicated region
    $region22: #{tpu_custom_call.1} parent=1 // pred_check
      _
    $region23: #{tpu_custom_call.1} parent=1 // pred_check_branch
      %24 = sbr.rel (0) target = $region25
    $region24: #{tpu_custom_call.1} parent=1 // pred_region
      _
    $region25: #{tpu_custom_call.1} parent=1 // pred_fallthru
      _
    // Predicated region
    $region26: #{tpu_custom_call.1} parent=1 // pred_check
      _
    $region27: #{tpu_custom_call.1} parent=1 // pred_check_branch
      %26 = sbr.rel (0) target = $region29
    $region28: #{tpu_custom_call.1} parent=1 // pred_region
      _
    $region29: #{tpu_custom_call.1} parent=1 // pred_fallthru
      _
    %v28 = vld [vmem:[%s0] sm:$0xff]
    %v29 = vld [vmem:[%s0 + $0x8] sm:$0xff]
    %v30 = vlaneseq
    %v31 = vand.u32 %v30, 127
    %32 = vset.pattern.permute.xlu0 0
    %33 = vperm.xlu0 %32, %v28
    %v34 = vpop.permute.xlu0 %33
    %35 = vset.pattern.permute.xlu0 0
    %36 = vperm.xlu0 %35, %v29
    %v37 = vpop.permute.xlu0 %36
    %vm38 = vcmp.eq.s32.totalorder %v31, %v34
    %vm39 = vcmp.eq.s32.totalorder %v31, %v37
    %v40 = vsel %vm38, 1, 0
    %v41 = vsel %vm39, 1, 0
    %v42 = vcvt.s32.f32 %v40
    %v43 = vcvt.s32.f32 %v41
    %v44 = vpack.c.bf16 %v43, %v42
    %v45 = vld [vmem:[%s2] sm:$0xf]
    %v46 = vld [vmem:[%s2 + $0x4] sm:$0xf]
    %v47 = vld [vmem:[%s2 + $0x8] sm:$0xf]
    %v48 = vld [vmem:[%s2 + $0xc] sm:$0xf]
    %v49 = vld [vmem:[%s2 + $0x10] sm:$0xf]
    %v50 = vld [vmem:[%s2 + $0x14] sm:$0xf]
    %v51 = vld [vmem:[%s2 + $0x18] sm:$0xf]
    %v52 = vld [vmem:[%s2 + $0x1c] sm:$0xf]
    %v61 = vunpack.c.l.b16 %v45
    %v62 = vunpack.c.l.b16 %v46
    %v63 = vunpack.c.l.b16 %v47
    %v64 = vunpack.c.l.b16 %v48
    %v65 = vunpack.c.l.b16 %v49
    %v66 = vunpack.c.l.b16 %v50
    %v67 = vunpack.c.l.b16 %v51
    %v68 = vunpack.c.l.b16 %v52
    %v69 = vpack.c.b16 %v62, %v61
    %v70 = vpack.c.b16 %v64, %v63
    %v71 = vpack.c.b16 %v66, %v65
    %v72 = vpack.c.b16 %v68, %v67
    %vm77 = vcmask 523264
    %v79 = vsel %vm77, %v44, 0
    %81 = vmatprep.subr.bf16.mxu0 0
    %82 = vmatpush1.bf16.msra.mxu0 %v69
    %83 = vmatprep.subr.bf16.mxu0 0
    %84 = vmatpush1.bf16.msra.mxu0 %v70
    %85 = vmatprep.subr.bf16.mxu0 0
    %86 = vmatpush1.bf16.msra.mxu0 %v71
    %87 = vmatprep.subr.bf16.mxu0 0
    %88 = vmatpush1.bf16.msra.mxu0 %v72
    %89 = vmatprep.subr.bf16.mxu0 0
    %90 = vmatpush1.bf16.msra.mxu0 0
    %91 = vmatprep.subr.bf16.mxu0 0
    %92 = vmatpush1.bf16.msra.mxu0 0
    %93 = vmatprep.subr.bf16.mxu0 0
    %94 = vmatpush1.bf16.msra.mxu0 0
    %95 = vmatprep.subr.bf16.mxu0 0
    %96 = vmatpush1.bf16.msra.mxu0 0
    %97 = vmatprep.subr.bf16.mxu0 0
    %98 = vmatpush1.bf16.msra.mxu0 0
    %99 = vmatprep.subr.bf16.mxu0 0
    %100 = vmatpush1.bf16.msra.mxu0 0
    %101 = vmatprep.subr.bf16.mxu0 0
    %102 = vmatpush1.bf16.msra.mxu0 0
    %103 = vmatprep.subr.bf16.mxu0 0
    %104 = vmatpush1.bf16.msra.mxu0 0
    %105 = vmatprep.subr.bf16.mxu0 0
    %106 = vmatpush1.bf16.msra.mxu0 0
    %107 = vmatprep.subr.bf16.mxu0 0
    %108 = vmatpush1.bf16.msra.mxu0 0
    %109 = vmatprep.subr.bf16.mxu0 0
    %110 = vmatpush1.bf16.msra.mxu0 0
    %111 = vmatprep.subr.bf16.mxu0 0
    %112 = vmatpush1.bf16.msra.mxu0 0
    %113 = vmatprep.mubr.bf16.mxu0 0
    %114 = vmatmul.mubr.bf16.gmra.mrb[0].mxu0 %v79
    %v115 = vpop.f32.mrb[0].mxu0
    %v116 = vadd.f32 0.0, %v115
    %v117 = vpop.f32.mrb[0].mxu0
    %v118 = vpop.f32.mrb[0].mxu0
    %v119 = vadd.f32 0.0, %v118
    %v120 = vpop.f32.mrb[0].mxu0
    %121 = vdwg.mxu0
    %v122 = vld [vmem:[%s3] sm:$0x1]
    %v123 = vld [vmem:[%s4] sm:$0x1]
    %vm124 = vcmask 261120
    %v125 = vsel %vm124, %v116, 0.0
    %126 = vadd.xlane.f32.xlu0 %v125
    %v127 = vpop.xlane.xlu0 %126
    %v128 = vsel %vm124, %v119, 0.0
    %129 = vadd.xlane.f32.xlu0 %v128
    %v130 = vpop.xlane.xlu0 %129
    %v131 = vrcp.pop 32.0
    %v132 = vmul.f32 %v127, %v131
    %v133 = vmul.f32 %v130, %v131
    %v134 = vsub.f32 %v116, %v132
    %v135 = vsub.f32 %v119, %v133
    %v136 = vmul.f32 %v134, %v134
    %v137 = vmul.f32 %v135, %v135
    %v138 = vsel %vm124, %v136, 0.0
    %139 = vadd.xlane.f32.xlu0 %v138
    %v140 = vpop.xlane.xlu0 %139
    %v141 = vsel %vm124, %v137, 0.0
    %142 = vadd.xlane.f32.xlu0 %v141
    %v143 = vpop.xlane.xlu0 %142
    %v144 = vmul.f32 %v140, %v131
    %v145 = vmul.f32 %v143, %v131
    %v146 = vadd.f32 %v144, 1e-05
    %v147 = vadd.f32 %v145, 1e-05
    %v148 = vrsqrt.pop %v146
    %v149 = vrsqrt.pop %v147
    %v150 = vmul.f32 %v134, %v148
    %v151 = vmul.f32 %v135, %v149
    %v153 = vlaneseq
    %v154 = vshrl.u32 %v153, 7
    %v155 = vsub.s32 0, %v154
    %v156 = vrot.slane %v122, %v155
    %v158 = vmul.f32 %v150, %v156
    %v159 = vmul.f32 %v151, %v156
    %v161 = vlaneseq
    %v162 = vshrl.u32 %v161, 7
    %v163 = vsub.s32 0, %v162
    %v164 = vrot.slane %v123, %v163
    %v166 = vadd.f32 %v158, %v164
    %v167 = vadd.f32 %v159, %v164
    %v168 = vld [vmem:[%s1] sm:$0xff]
    %v169 = vld [vmem:[%s1 + $0x8] sm:$0xff]
    %171 = vset.pattern.permute.xlu0 0
    %172 = vperm.xlu0 %171, %v168
    %v173 = vpop.permute.xlu0 %172
    %176 = vset.pattern.permute.xlu0 0
    %177 = vperm.xlu0 %176, %v169
    %v178 = vpop.permute.xlu0 %177
    %v180 = vmul.f32 %v166, %v173
    %v181 = vmul.f32 %v167, %v178
    %v182 = vpack.c.bf16 %v181, %v180
    %v183 = vld [vmem:[%s5] sm:$0xff]
    %v184 = vld [vmem:[%s5 + $0x8] sm:$0xf]
    %v185 = vld [vmem:[%s5 + $0xc] sm:$0xff]
    %v186 = vld [vmem:[%s5 + $0x14] sm:$0xf]
    %v187 = vld [vmem:[%s5 + $0x18] sm:$0xff]
    %v188 = vld [vmem:[%s5 + $0x20] sm:$0xf]
    %v189 = vld [vmem:[%s5 + $0x24] sm:$0xff]
    %v190 = vld [vmem:[%s5 + $0x2c] sm:$0xf]
    %v191 = vld [vmem:[%s6] sm:$0x7]
    %v193 = vlaneseq
    %v194 = vshrl.u32 %v193, 7
    %v195 = vsub.s32 0, %v194
    %v196 = vrot.slane %v191, %v195
    %v197 = vlaneseq
    %v198 = vshrl.u32 %v197, 7
    %v199 = vsub.s32 1, %v198
    %v200 = vrot.slane %v191, %v199
    %v201 = vlaneseq
    %v202 = vshrl.u32 %v201, 7
    %v203 = vsub.s32 2, %v202
    %v204 = vrot.slane %v191, %v203
    %v216 = vunpack.c.l.b16 %v183
    %v217 = vunpack.c.h.b16 %v183
    %v218 = vunpack.c.l.b16 %v184
    %v219 = vunpack.c.l.b16 %v185
    %v220 = vunpack.c.h.b16 %v185
    %v221 = vunpack.c.l.b16 %v186
    %v222 = vunpack.c.l.b16 %v187
    %v223 = vunpack.c.h.b16 %v187
    %v224 = vunpack.c.l.b16 %v188
    %v225 = vunpack.c.l.b16 %v189
    %v226 = vunpack.c.h.b16 %v189
    %v227 = vunpack.c.l.b16 %v190
    %v228 = vpack.c.b16 %v219, %v216
    %v229 = vpack.c.b16 %v220, %v217
    %v230 = vpack.c.b16 %v221, %v218
    %v231 = vpack.c.b16 %v225, %v222
    %v232 = vpack.c.b16 %v226, %v223
    %v233 = vpack.c.b16 %v227, %v224
    %v241 = vsel %vm124, %v182, 0
    %243 = vmatprep.subr.bf16.mxu0 %v229
    %244 = vmatpush1.bf16.msra.mxu0 %v228
    %245 = vmatprep.subr.bf16.mxu0 %v232
    %246 = vmatpush1.bf16.msra.mxu0 %v231
    %247 = vmatprep.subr.bf16.mxu0 0
    %248 = vmatpush1.bf16.msra.mxu0 0
    %249 = vmatprep.subr.bf16.mxu0 0
    %250 = vmatpush1.bf16.msra.mxu0 0
    %251 = vmatprep.subr.bf16.mxu0 0
    %252 = vmatpush1.bf16.msra.mxu0 0
    %253 = vmatprep.subr.bf16.mxu0 0
    %254 = vmatpush1.bf16.msra.mxu0 0
    %255 = vmatprep.subr.bf16.mxu0 0
    %256 = vmatpush1.bf16.msra.mxu0 0
    %257 = vmatprep.subr.bf16.mxu0 0
    %258 = vmatpush1.bf16.msra.mxu0 0
    %259 = vmatprep.subr.bf16.mxu0 0
    %260 = vmatpush1.bf16.msra.mxu0 0
    %261 = vmatprep.subr.bf16.mxu0 0
    %262 = vmatpush1.bf16.msra.mxu0 0
    %263 = vmatprep.subr.bf16.mxu0 0
    %264 = vmatpush1.bf16.msra.mxu0 0
    %265 = vmatprep.subr.bf16.mxu0 0
    %266 = vmatpush1.bf16.msra.mxu0 0
    %267 = vmatprep.subr.bf16.mxu0 0
    %268 = vmatpush1.bf16.msra.mxu0 0
    %269 = vmatprep.subr.bf16.mxu0 0
    %270 = vmatpush1.bf16.msra.mxu0 0
    %271 = vmatprep.subr.bf16.mxu0 0
    %272 = vmatpush1.bf16.msra.mxu0 0
    %273 = vmatprep.subr.bf16.mxu0 0
    %274 = vmatpush1.bf16.msra.mxu0 0
    %275 = vmatprep.mubr.bf16.mxu0 0
    %276 = vmatmul.mubr.bf16.gmra.mrb[0].mxu0 %v241
    %v277 = vpop.f32.mrb[0].mxu0
    %v278 = vadd.f32 %v196, %v277
    %v279 = vpop.f32.mrb[0].mxu0
    %v280 = vadd.f32 %v200, %v279
    %v281 = vpop.f32.mrb[0].mxu0
    %v282 = vadd.f32 %v196, %v281
    %v283 = vpop.f32.mrb[0].mxu0
    %v284 = vadd.f32 %v200, %v283
    %285 = vdwg.mxu0
    %286 = vmatprep.subr.bf16.mxu0 0
    %287 = vmatpush1.bf16.msra.mxu0 %v230
    %288 = vmatprep.subr.bf16.mxu0 0
    %289 = vmatpush1.bf16.msra.mxu0 %v233
    %290 = vmatprep.subr.bf16.mxu0 0
    %291 = vmatpush1.bf16.msra.mxu0 0
    %292 = vmatprep.subr.bf16.mxu0 0
    %293 = vmatpush1.bf16.msra.mxu0 0
    %294 = vmatprep.subr.bf16.mxu0 0
    %295 = vmatpush1.bf16.msra.mxu0 0
    %296 = vmatprep.subr.bf16.mxu0 0
    %297 = vmatpush1.bf16.msra.mxu0 0
    %298 = vmatprep.subr.bf16.mxu0 0
    %299 = vmatpush1.bf16.msra.mxu0 0
    %300 = vmatprep.subr.bf16.mxu0 0
    %301 = vmatpush1.bf16.msra.mxu0 0
    %302 = vmatprep.subr.bf16.mxu0 0
    %303 = vmatpush1.bf16.msra.mxu0 0
    %304 = vmatprep.subr.bf16.mxu0 0
    %305 = vmatpush1.bf16.msra.mxu0 0
    %306 = vmatprep.subr.bf16.mxu0 0
    %307 = vmatpush1.bf16.msra.mxu0 0
    %308 = vmatprep.subr.bf16.mxu0 0
    %309 = vmatpush1.bf16.msra.mxu0 0
    %310 = vmatprep.subr.bf16.mxu0 0
    %311 = vmatpush1.bf16.msra.mxu0 0
    %312 = vmatprep.subr.bf16.mxu0 0
    %313 = vmatpush1.bf16.msra.mxu0 0
    %314 = vmatprep.subr.bf16.mxu0 0
    %315 = vmatpush1.bf16.msra.mxu0 0
    %316 = vmatprep.subr.bf16.mxu0 0
    %317 = vmatpush1.bf16.msra.mxu0 0
    %318 = vmatprep.mubr.bf16.mxu0 0
    %319 = vmatmul.mubr.bf16.gmra.mrb[0].mxu0 %v241
    %v320 = vpop.f32.mrb[0].mxu0
    %v321 = vadd.f32 %v204, %v320
    %v322 = vpop.f32.mrb[0].mxu0
    %v323 = vpop.f32.mrb[0].mxu0
    %v324 = vadd.f32 %v204, %v323
    %v325 = vpop.f32.mrb[0].mxu0
    %326 = vdwg.mxu0
    %327 = vst [vmem:[#allocation2] sm:$0xff] %v278
    %328 = vst.msk [vmem:[#allocation2 + $0x8] sm:$0xff] %vm77, %v280
    %329 = vst [vmem:[#allocation2 + $0x10] sm:$0xff] %v282
    %330 = vst.msk [vmem:[#allocation2 + $0x18] sm:$0xff] %vm77, %v284
    %335 = vrot.lane.b32.xlu0 %v280, 64
    %v336 = vpop.permute.xlu0 %335
    %337 = vrot.lane.b32.xlu0 %v321, 64
    %v338 = vpop.permute.xlu0 %337
    %339 = vrot.lane.b32.xlu0 %v284, 64
    %v340 = vpop.permute.xlu0 %339
    %341 = vrot.lane.b32.xlu0 %v324, 64
    %v342 = vpop.permute.xlu0 %341
    %v343 = vsel %vm77, %v336, %v338
    %v344 = vsel %vm77, %v340, %v342
    %s349 = scalar_lea.vmem [#allocation2], 32
    %350 = vst [vmem:[%s349] sm:$0xff] %v343
    %351 = vst.msk [vmem:[%s349 + $0x8] sm:$0xff] %vm77, %v338
    %352 = vst [vmem:[%s349 + $0x10] sm:$0xff] %v344
    %353 = vst.msk [vmem:[%s349 + $0x18] sm:$0xff] %vm77, %v342
    // Predicated region
    $region30: #{tpu_custom_call.1} parent=1 // pred_check
      _
    $region31: #{tpu_custom_call.1} parent=1 // pred_check_branch
      %355 = sbr.rel (0) target = $region33
    $region32: #{tpu_custom_call.1} parent=1 // pred_region
      %s357 = ssub.s32 1024, 1024
      %358 = vsyncadd [#allocation3], %s357
      %s359 = sshll.u32 [#allocation2], 4
      %s360 = int_to_ptr.vmem [resolvable:$true] %s359
      %365 = dma.vmem_to_hbm [thread:$0]  %s360, 1024, %s7, [#allocation3], 256, 256, 16
    $region33: #{tpu_custom_call.1} parent=1 // pred_fallthru
      _
    // Predicated region
    $region34: #{tpu_custom_call.1} parent=1 // pred_check
      _
    $region35: #{tpu_custom_call.1} parent=1 // pred_check_branch
      %367 = sbr.rel (0) target = $region37
    $region36: #{tpu_custom_call.1} parent=1 // pred_region
      %368 = dma.done [#allocation3], 1024
    $region37: #{tpu_custom_call.1} parent=1 // pred_fallthru
      _
    %369 = vsyncpa [#allocation3], 1

</llo_original>
